<compile_context>
chip_gen: v7x
topology: tpu7x:2x2x1
jax: 0.10.0
libtpu: 0.0.40
codegen_flags: <defaults>
</compile_context>

<pallas_src>
import functools
import math

import jax
import jax.numpy as jnp
from jax import lax
from jax.experimental import pallas as pl
from jax.experimental.pallas import tpu as pltpu


_VMEM_LIMIT = 64 * 1024 * 1024   # fits v7x's 64 MiB physical VMEM; > 32 MiB default


def _largest_divisor(n, cap):
    for t in range(min(n, cap), 0, -1):
        if n % t == 0:
            return t
    return 1


# ----------------------------------------------------------------------------
# In-kernel helpers
# ----------------------------------------------------------------------------
def _conv3x3_acc(x, w_at, cout):
    """3x3 'same' conv accumulation (no bias / activation), padding in-kernel.

    x: (H, W, Cin) bf16 value.  w_at(kh, kw) -> (Cin, cout) bf16 tap weight.
    Returns the f32 accumulator flattened to (H*W, cout).

    The two W-shifted copies are built once per layer (not per tap); H shifts
    are plain row slices of a flattened ((H+2)*W, Cin) matrix; every MXU dot
    contracts over the full Cin.
    """
    H, W, cin = x.shape
    zcol = jnp.zeros((H, 1, cin), x.dtype)
    x_m = jnp.concatenate([zcol, x[:, :W - 1, :]], axis=1)   # value at w is x[w-1]
    x_p = jnp.concatenate([x[:, 1:, :], zcol], axis=1)       # value at w is x[w+1]
    zrow = jnp.zeros((1, W, cin), x.dtype)

    acc = jnp.zeros((H * W, cout), jnp.float32)              # fits in vregs per tile
    for kw, xs in enumerate((x_m, x, x_p)):                  # kw -> x[:, w + kw - 1]
        xflat = jnp.concatenate([zrow, xs, zrow], axis=0).reshape((H + 2) * W, cin)
        for kh in range(3):                                  # row slice -> x[h + kh - 1]
            patch = xflat[kh * W:kh * W + H * W]
            acc = acc + jnp.dot(patch, w_at(kh, kw),
                                preferred_element_type=jnp.float32)
    return acc


def _relu_bf16(acc_flat):
    return jnp.maximum(acc_flat, 0.0).astype(jnp.bfloat16)


def _final_1x1(y_flat, w1_ref, b_ref, o_ref, H, W):
    """Fused final 1x1 conv + bias, written directly as NCHW (lane-dense W)."""
    out = lax.dot_general(                                   # (classes, H*W)
        w1_ref[...], y_flat,
        dimension_numbers=(((1,), (1,)), ((), ())),
        preferred_element_type=jnp.float32)
    out = out + b_ref[...]                                   # (classes, 1) broadcast
    c = out.shape[0]
    o_ref[...] = out.reshape(1, c, H, W).astype(o_ref.dtype)


# ----------------------------------------------------------------------------
# Fused head kernels
# ----------------------------------------------------------------------------
def _stereo_head_kernel(xl_ref, xr_ref, wl_ref, wr_ref, w1_ref, b_ref, o_ref):
    # conv3x3(concat(l, r) -> 256, no bias) + ReLU + conv1x1(256 -> classes) + bias
    H, W = xl_ref.shape[1], xl_ref.shape[2]
    xl = xl_ref[0]
    xr = xr_ref[0]
    # split-K over the stereo pair: conv(concat(l,r), w) == conv(l, wl) + conv(r, wr)
    acc = _conv3x3_acc(xl, lambda kh, kw: wl_ref[kh, kw], 256)
    acc = acc + _conv3x3_acc(xr, lambda kh, kw: wr_ref[kh, kw], 256)
    y = _relu_bf16(acc)
    _final_1x1(y, w1_ref, b_ref, o_ref, H, W)


def _left_head_kernel(x_ref, w0_ref, wmid_ref, w1_ref, b_ref, o_ref, *, n_mid):
    # 5x [conv3x3 -> 256, no bias, ReLU] + conv1x1(256 -> classes) + bias
    H, W = x_ref.shape[1], x_ref.shape[2]
    x = x_ref[0]
    y = _relu_bf16(_conv3x3_acc(x, lambda kh, kw: w0_ref[kh, kw], 256))
    for i in range(n_mid):
        y3 = y.reshape(H, W, 256)
        y = _relu_bf16(_conv3x3_acc(
            y3, lambda kh, kw, i=i: wmid_ref[i, kh, kw], 256))
    _final_1x1(y, w1_ref, b_ref, o_ref, H, W)


# ----------------------------------------------------------------------------
# Feature-extraction stand-in: stride-`down_ratio` 3x3 conv as one MXU matmul.
# ----------------------------------------------------------------------------
def _feature_kernel(p_ref, w_ref, b_ref, o_ref):
    th, wo, k = p_ref.shape[1], p_ref.shape[2], p_ref.shape[3]
    cf = w_ref.shape[1]
    p = p_ref[0].reshape(th * wo, k)
    acc = jnp.dot(p, w_ref[...], preferred_element_type=jnp.float32)
    acc = acc + b_ref[...]
    o_ref[...] = jnp.maximum(acc, 0.0).reshape(1, th, wo, cf).astype(o_ref.dtype)


def _strided_patches(x_nhwc, ksize, stride):
    """im2col for a strided 'same' conv (output is smaller than the input)."""
    N, H, W, C = x_nhwc.shape
    pad = ksize // 2
    xp = jnp.pad(x_nhwc, ((0, 0), (pad, pad), (pad, pad), (0, 0)))
    Ho = (H + 2 * pad - ksize) // stride + 1
    Wo = (W + 2 * pad - ksize) // stride + 1
    pieces = []
    for kh in range(ksize):
        for kw in range(ksize):
            pieces.append(
                xp[:, kh:kh + stride * (Ho - 1) + 1:stride,
                   kw:kw + stride * (Wo - 1) + 1:stride, :])
    return jnp.concatenate(pieces, axis=-1)     # (N, Ho, Wo, ksize*ksize*C)


# ----------------------------------------------------------------------------
# pallas_call wrappers
# ----------------------------------------------------------------------------
def _feature_conv(patches, w, b, cf):
    N, Ho, Wo, K = patches.shape
    th = _largest_divisor(Ho, 64)               # spatial tiling axis (trivial at demo size)
    return pl.pallas_call(
        _feature_kernel,
        out_shape=jax.ShapeDtypeStruct((N, Ho, Wo, cf), jnp.bfloat16),
        grid_spec=pltpu.PrefetchScalarGridSpec(
            num_scalar_prefetch=0,
            grid=(N, Ho // th),
            in_specs=[
                pl.BlockSpec((1, th, Wo, K), lambda n, h: (n, h, 0, 0)),
                pl.BlockSpec((K, cf), lambda n, h: (0, 0)),
                pl.BlockSpec((1, cf), lambda n, h: (0, 0)),
            ],
            out_specs=pl.BlockSpec((1, th, Wo, cf), lambda n, h: (n, h, 0, 0)),
        ),
        compiler_params=pltpu.CompilerParams(
            dimension_semantics=("parallel", "parallel"),
            vmem_limit_bytes=_VMEM_LIMIT),
    )(patches, w, b)


def _stereo_head(feat_l, feat_r, wl, wr, w1, b):
    N, H, W, Cf = feat_l.shape
    C = w1.shape[0]
    return pl.pallas_call(
        _stereo_head_kernel,
        out_shape=jax.ShapeDtypeStruct((N, C, H, W), jnp.float32),
        grid_spec=pltpu.PrefetchScalarGridSpec(
            num_scalar_prefetch=0,
            grid=(N,),
            in_specs=[
                pl.BlockSpec((1, H, W, Cf), lambda n: (n, 0, 0, 0)),
                pl.BlockSpec((1, H, W, Cf), lambda n: (n, 0, 0, 0)),
                pl.BlockSpec((3, 3, Cf, 256), lambda n: (0, 0, 0, 0)),
                pl.BlockSpec((3, 3, Cf, 256), lambda n: (0, 0, 0, 0)),
                pl.BlockSpec((C, 256), lambda n: (0, 0)),
                pl.BlockSpec((C, 1), lambda n: (0, 0)),
            ],
            out_specs=pl.BlockSpec((1, C, H, W), lambda n: (n, 0, 0, 0)),
        ),
        compiler_params=pltpu.CompilerParams(
            dimension_semantics=("parallel",),
            vmem_limit_bytes=_VMEM_LIMIT),
    )(feat_l, feat_r, wl, wr, w1, b)


def _left_head(feat_l, w0, wmid, w1, b):
    N, H, W, Cf = feat_l.shape
    C = w1.shape[0]
    n_mid = wmid.shape[0]
    return pl.pallas_call(
        functools.partial(_left_head_kernel, n_mid=n_mid),
        out_shape=jax.ShapeDtypeStruct((N, C, H, W), jnp.float32),
        grid_spec=pltpu.PrefetchScalarGridSpec(
            num_scalar_prefetch=0,
            grid=(N,),
            in_specs=[
                pl.BlockSpec((1, H, W, Cf), lambda n: (n, 0, 0, 0)),
                pl.BlockSpec((3, 3, Cf, 256), lambda n: (0, 0, 0, 0)),
                pl.BlockSpec((n_mid, 3, 3, 256, 256), lambda n: (0, 0, 0, 0, 0)),
                pl.BlockSpec((C, 256), lambda n: (0, 0)),
                pl.BlockSpec((C, 1), lambda n: (0, 0)),
            ],
            out_specs=pl.BlockSpec((1, C, H, W), lambda n: (n, 0, 0, 0)),
        ),
        compiler_params=pltpu.CompilerParams(
            dimension_semantics=("parallel",),
            vmem_limit_bytes=_VMEM_LIMIT),
    )(feat_l, w0, wmid, w1, b)


# ----------------------------------------------------------------------------
# Deterministic parameter construction (PyTorch-like uniform fan-in init).
# ----------------------------------------------------------------------------
def _uniform(key, shape, fan_in):
    bound = 1.0 / math.sqrt(fan_in)
    return jax.random.uniform(key, shape, jnp.float32, -bound, bound)


class StereoNetworkPallas:
    """Pallas re-implementation of stereo_network.forward (useCostVolume=False)."""

    def __init__(self, heads, *, final_kernel=1, down_ratio=4, key=None):
        # TODO(synk): fused head kernels only support final_kernel == 1 (the default).
        assert final_kernel == 1
        self.heads = dict(heads)
        self.left_only = ['kept_type']
        self.down_ratio = down_ratio
        self.first_level = int(round(math.log2(down_ratio)))
        channels = [16, 32, 64, 128, 256, 512]      # DLA-34 channel list
        cf = channels[self.first_level]             # = 64 for down_ratio=4
        self.cf = cf

        keys = iter(jax.random.split(key, 128))

        # TODO(synk): feature_extraction_dla34 backbone is external to the
        # provided module; stand-in = one 3x3 conv (3 -> cf) + ReLU with the
        # /down_ratio subsample folded in as a stride-down_ratio conv.
        wf = _uniform(next(keys), (3, 3, 3, cf), 3 * 3 * 3)
        self.feat_w = wf.reshape(9 * 3, cf).astype(jnp.bfloat16)
        self.feat_b = jnp.zeros((1, cf), jnp.float32)

        # Detection heads (same conv stacks as the PyTorch __init__).
        self.head_params = {}
        for head, classes in self.heads.items():
            bias_val = -2.19 if 'hm' in head else 0.0   # fill_fc_weights -> 0
            b = jnp.full((classes, 1), bias_val, jnp.float32)
            w1 = _uniform(next(keys), (classes, 256), 256).astype(jnp.bfloat16)
            if head in self.left_only:
                w0 = _uniform(next(keys), (3, 3, cf, 256), 9 * cf)
                wmid = jnp.stack([_uniform(next(keys), (3, 3, 256, 256), 9 * 256)
                                  for _ in range(4)])
                self.head_params[head] = dict(
                    w0=w0.astype(jnp.bfloat16), wmid=wmid.astype(jnp.bfloat16),
                    w1=w1, b=b)
            else:
                wfull = _uniform(next(keys), (3, 3, 2 * cf, 256), 9 * 2 * cf)
                self.head_params[head] = dict(
                    wl=wfull[:, :, :cf, :].astype(jnp.bfloat16),
                    wr=wfull[:, :, cf:, :].astype(jnp.bfloat16),
                    w1=w1, b=b)

    def _extract(self, img_nhwc):
        patches = _strided_patches(img_nhwc, 3, self.down_ratio).astype(jnp.bfloat16)
        return _feature_conv(patches, self.feat_w, self.feat_b, self.cf)

    def forward(self, batch):
        # inputs are NCHW like the PyTorch module; transpose once at the boundary
        left = jnp.transpose(batch['input'], (0, 2, 3, 1)).astype(jnp.float32)
        right = jnp.transpose(batch['input_right'], (0, 2, 3, 1)).astype(jnp.float32)

        feat_l = self._extract(left)      # (N, H/dr, W/dr, cf) bf16
        feat_r = self._extract(right)

        z = {}
        for head in self.heads:
            p = self.head_params[head]
            if head in self.left_only:
                z[head] = _left_head(feat_l, p['w0'], p['wmid'], p['w1'], p['b'])
            else:
                z[head] = _stereo_head(feat_l, feat_r, p['wl'], p['wr'],
                                       p['w1'], p['b'])
        # Outputs are already NCHW f32 (written lane-dense by the kernels).

        # TODO(synk): useCostVolume branch (bbox_decode, get_proposal_shift,
        # get_voxel, F.grid_sample over a data-dependent object count,
        # PointNetDetector) depends on undefined externals and host-side
        # dynamic loops; not implemented.
        return [z]


# ----------------------------------------------------------------------------
# Pure-JAX reference (f32, XLA convs) for a tolerance check of the kernels.
# ----------------------------------------------------------------------------
def _ref_conv(x, w, stride, pad):
    return lax.conv_general_dilated(
        x, w, window_strides=(stride, stride),
        padding=[(pad, pad), (pad, pad)],
        dimension_numbers=('NHWC', 'HWIO', 'NHWC'))


def _reference_forward(net, batch):
    left = jnp.transpose(batch['input'], (0, 2, 3, 1)).astype(jnp.float32)
    right = jnp.transpose(batch['input_right'], (0, 2, 3, 1)).astype(jnp.float32)
    wf = net.feat_w.astype(jnp.float32).reshape(3, 3, 3, net.cf)
    bf = net.feat_b.reshape(1, 1, 1, -1)
    fl = jnp.maximum(_ref_conv(left, wf, net.down_ratio, 1) + bf, 0.0)
    fr = jnp.maximum(_ref_conv(right, wf, net.down_ratio, 1) + bf, 0.0)
    z = {}
    for head in net.heads:
        p = {k: v.astype(jnp.float32) for k, v in net.head_params[head].items()}
        if head in net.left_only:
            y = jnp.maximum(_ref_conv(fl, p['w0'], 1, 1), 0.0)
            for i in range(p['wmid'].shape[0]):
                y = jnp.maximum(_ref_conv(y, p['wmid'][i], 1, 1), 0.0)
        else:
            x = jnp.concatenate([fl, fr], axis=-1)
            w = jnp.concatenate([p['wl'], p['wr']], axis=2)
            y = jnp.maximum(_ref_conv(x, w, 1, 1), 0.0)
        z[head] = jnp.einsum('nhwc,oc->nohw', y, p['w1']) + p['b'].reshape(1, -1, 1, 1)
    return z


if __name__ == "__main__":
    key = jax.random.PRNGKey(0)
    k_in, k_in_r, k_net = jax.random.split(key, 3)

    batch = {
        'input': jax.random.normal(k_in, (2, 3, 16, 16), jnp.float32),
        'input_right': jax.random.normal(k_in_r, (2, 3, 16, 16), jnp.float32),
    }
    heads = {'hm': 3, 'wh': 2, 'reg': 2, 'kept_type': 8}

    net = StereoNetworkPallas(heads, final_kernel=1, down_ratio=4, key=k_net)
    out = net.forward(batch)
    ref = _reference_forward(net, batch)

    for name, arr in out[0].items():
        arr = jax.block_until_ready(arr)
        assert arr.shape == (2, heads[name], 4, 4), (name, arr.shape)
        assert bool(jnp.all(jnp.isfinite(arr))), name
        # bf16 kernel path vs. f32 XLA reference: loose tolerance
        assert bool(jnp.allclose(arr, ref[name], rtol=5e-2, atol=5e-2)), name

    print("KERNEL_OK")
</pallas_src>

<mosaic_0001>
module attributes {stable_mosaic.version = 11 : i64} {
  func.func @_feature_kernel(%arg0: i32, %arg1: i32, %arg2: memref<1x4x4x27xbf16, #tpu.memory_space<vmem>>, %arg3: memref<27x64xbf16, #tpu.memory_space<vmem>>, %arg4: memref<1x64xf32, #tpu.memory_space<vmem>>, %arg5: memref<1x4x4x64xbf16, #tpu.memory_space<vmem>>) attributes {dimension_semantics = [#tpu.dimension_semantics<parallel>, #tpu.dimension_semantics<parallel>], iteration_bounds = array<i64: 2, 1>, scalar_prefetch = 0 : i64, scratch_operands = 0 : i64, tpu.core_type = #tpu.core_type<tc>, window_params = [{transform_indices = @transform_0, window_bounds = array<i64: 1, 4, 4, 27>}, {pipeline_mode = #tpu.pipeline_mode<synchronous>, transform_indices = @transform_1, window_bounds = array<i64: 27, 64>}, {pipeline_mode = #tpu.pipeline_mode<synchronous>, transform_indices = @transform_2, window_bounds = array<i64: 1, 64>}, {transform_indices = @transform_3, window_bounds = array<i64: 1, 4, 4, 64>}]} {
    %c0 = arith.constant 0 : index
    %c0_0 = arith.constant 0 : index
    %c0_1 = arith.constant 0 : index
    %c0_2 = arith.constant 0 : index
    %0 = vector.load %arg2[%c0, %c0_0, %c0_1, %c0_2] : memref<1x4x4x27xbf16, #tpu.memory_space<vmem>>, vector<1x4x4x27xbf16>
    %1 = vector.shape_cast %0 : vector<1x4x4x27xbf16> to vector<4x4x27xbf16>
    %2 = vector.shape_cast %1 : vector<4x4x27xbf16> to vector<16x27xbf16>
    %c0_3 = arith.constant 0 : index
    %c0_4 = arith.constant 0 : index
    %3 = vector.load %arg3[%c0_3, %c0_4] : memref<27x64xbf16, #tpu.memory_space<vmem>>, vector<27x64xbf16>
    %cst = arith.constant dense<0.000000e+00> : vector<16x64xf32>
    %4 = tpu.matmul %2, %3, %cst {dimension_numbers = #tpu.dot_dimension_numbers<[1], [0], [0], [1], [0, 0, 1, 1], [], []>} : vector<16x27xbf16>, vector<27x64xbf16>, vector<16x64xf32> -> vector<16x64xf32>
    %c0_5 = arith.constant 0 : index
    %c0_6 = arith.constant 0 : index
    %5 = vector.load %arg4[%c0_5, %c0_6] : memref<1x64xf32, #tpu.memory_space<vmem>>, vector<1x64xf32>
    %6 = vector.broadcast %5 : vector<1x64xf32> to vector<16x64xf32>
    %7 = arith.addf %4, %6 : vector<16x64xf32>
    %cst_7 = arith.constant 0.000000e+00 : f32
    %8 = vector.broadcast %cst_7 : f32 to vector<16x64xf32>
    %9 = arith.maximumf %7, %8 : vector<16x64xf32>
    %10 = vector.shape_cast %9 : vector<16x64xf32> to vector<1x4x4x64xf32>
    %11 = arith.truncf %10 : vector<1x4x4x64xf32> to vector<1x4x4x64xbf16>
    %c0_8 = arith.constant 0 : index
    %c0_9 = arith.constant 0 : index
    %c0_10 = arith.constant 0 : index
    %c0_11 = arith.constant 0 : index
    %12 = vector.load %arg5[%c0_8, %c0_9, %c0_10, %c0_11] : memref<1x4x4x64xbf16, #tpu.memory_space<vmem>>, vector<1x4x4x64xbf16>
    tpu.vector_store %arg5[%c0_8, %c0_9, %c0_10, %c0_11], %11 {strides = array<i32>} : memref<1x4x4x64xbf16, #tpu.memory_space<vmem>>, vector<1x4x4x64xbf16>,
    return
  }
  func.func @transform_0(%arg0: i32, %arg1: i32) -> (i32, i32, i32, i32) {
    %c0_i32 = arith.constant 0 : i32
    %c0_i32_0 = arith.constant 0 : i32
    %c0_i32_1 = arith.constant 0 : i32
    return %arg0, %arg1, %c0_i32, %c0_i32_0 : i32, i32, i32, i32
  }
  func.func @transform_1(%arg0: i32, %arg1: i32) -> (i32, i32) {
    %c0_i32 = arith.constant 0 : i32
    %c0_i32_0 = arith.constant 0 : i32
    %c0_i32_1 = arith.constant 0 : i32
    return %c0_i32, %c0_i32_0 : i32, i32
  }
  func.func @transform_2(%arg0: i32, %arg1: i32) -> (i32, i32) {
    %c0_i32 = arith.constant 0 : i32
    %c0_i32_0 = arith.constant 0 : i32
    %c0_i32_1 = arith.constant 0 : i32
    return %c0_i32, %c0_i32_0 : i32, i32
  }
  func.func @transform_3(%arg0: i32, %arg1: i32) -> (i32, i32, i32, i32) {
    %c0_i32 = arith.constant 0 : i32
    %c0_i32_0 = arith.constant 0 : i32
    %c0_i32_1 = arith.constant 0 : i32
    return %arg0, %arg1, %c0_i32, %c0_i32_0 : i32, i32, i32, i32
  }
}

</mosaic_0001>

<llo_original>
// kernel: tpu_custom_call.1
$region0: #{tpu_custom_call.1}
  #allocation0 [shape = 'u32[]', space=smem, size = 0x4, offset = 0x4, fixed_abs, tag = 'smem constant byte address 0x4 - core index']
  #allocation1 [shape = 'u32[144,128]{1,0:T(1,128)}', space=vmem, size = 0x12000, scoped, tag = 'internal scratch']
  %s0 = inlined_call_operand.hbm [shape: bf16[2,4,4,27], index: 0, kind: input, shape index: {}]
  %s1 = inlined_call_operand.hbm [shape: bf16[27,64], index: 1, kind: input, shape index: {}]
  %s2 = inlined_call_operand.hbm [shape: f32[1,64], index: 2, kind: input, shape index: {}]
  %s3 = inlined_call_operand.hbm [shape: bf16[2,4,4,64], index: 3, kind: output, shape index: {}]
  %s4 = sld [smem:[#allocation0]]
  $region57: #{tpu_custom_call.1} parent=0
    _
  %s6 = ssub.s32 1, %s4
  %s7 = scalar_select 0, %s6, %s4
  $region1: #{tpu_custom_call.1} parent=0
    #allocation2 [shape = 'u8[8192]{0}', space=vmem, size = 0x2000, scoped, tag = 'input window, operand 0']
    #allocation3 [shape = 's32[2]{0}', space=sflag, size = 0x8, scoped, tag = 'scoped memory for tpu_custom_call.1']
    #allocation4 [shape = 's32[2]{0}', space=sflag, size = 0x8, scoped, tag = 'scoped memory for tpu_custom_call.1']
    #allocation5 [shape = 'u8[8192]{0}', space=vmem, size = 0x2000, scoped, tag = 'input window, operand 1, single buffered']
    #allocation6 [shape = 's32[1]{0}', space=sflag, size = 0x4, scoped, tag = 'scoped memory for tpu_custom_call.1']
    #allocation7 [shape = 'u8[512]{0}', space=vmem, size = 0x400, scoped, tag = 'input window, operand 2, single buffered']
    #allocation8 [shape = 'u8[8192]{0}', space=vmem, size = 0x2000, scoped, tag = 'output window, operand 0']
    %8 = vsyncpa [#allocation3], 0
    %s9 = scalar_lea.sflag [#allocation3], 1
    %10 = vsyncpa %s9, 0
    %11 = vsyncpa [#allocation6], 0
    %12 = vsyncpa [#allocation4], 0
    %s13 = scalar_lea.sflag [#allocation4], 1
    %14 = vsyncpa %s13, 0
    loop: start=0, step=1, limit=4
    $region2: #{tpu_custom_call.1} parent=1 // loop_pre_header
      _
    $region3: #{tpu_custom_call.1} parent=1 // loop_header
      %s16 = sphi 0, %s20
      %p17 = scmp.ge.s32.totalorder %s16, 4
      %s23 = sphi 0, %s35
      %s24 = sphi 0, %s31
      %s25 = sphi 0, %s23
      %s26 = sphi 0, %s24
      %s27 = sphi 0, %s25
      %s28 = sphi 0, %s26
      %s40 = sphi 0, %s42
      %s43 = sphi 0, %s40
      %s44 = sphi 0, %s43
      %s60 = sphi 0, %s44
      %s64 = sphi 0, %s64
      %s66 = sphi 0, %s64
      %s67 = sphi 0, %s66
      %s81 = sphi 0, %s67
      %s85 = sphi 0, %s85
      %s87 = sphi 0, %s85
      %s88 = sphi 0, %s87
      %s102 = sphi 0, %s88
      %s110 = sphi 0, %s112
      %s113 = sphi 0, %s110
      %s114 = sphi 0, %s113
      %s130 = sphi 0, %s114
    $region4: #{tpu_custom_call.1} parent=1 // loop_header_branch
      %19 = sbr.rel (%p17) target = $region8
    $region5: #{tpu_custom_call.1} parent=1 // loop_body
      %s21 = ssub.s32 %s16, 1
      %s22 = ssub.s32 %s16, 2
      %s29 = sadd.s32 1, %s24
      %p30 = scmp.ge.s32.totalorder %s29, 1
      %s31 = scalar_select %p30, 0, %s29
      %s32 = sadd.s32 1, %s23
      %s33 = scalar_select %p30, %s32, %s23
      %p34 = scmp.ge.s32.totalorder %s33, 2
      %s35 = scalar_select %p34, 0, %s33
      %s36 = ssub.s32 %s23, %s35
      %s37 = ssub.s32 %s24, %s31
      %s38 = sor.u32 %s36, %s37
      %p39 = scmp.eq.s32.totalorder %s38, 0
      %s41 = sadd.s32 %s40, 1
      %s42 = scalar_select %p39, %s40, %s41
      %p45 = pneg %p39
      %p46 = scmp.eq.s32.totalorder %s16, 1
      %p47 = por %p45, %p46
      %p48 = scmp.ne.s32.totalorder %s40, %s43
      %p49 = scmp.eq.s32.totalorder %s16, 0
      %p50 = por %p48, %p49
      %p51 = scmp.ne.s32.totalorder %s40, %s43
      %p52 = scmp.eq.s32.totalorder %s21, 1
      %p53 = por %p51, %p52
      %p54 = scmp.ne.s32.totalorder %s43, %s44
      %p55 = scmp.eq.s32.totalorder %s21, 0
      %p56 = por %p54, %p55
      %p57 = scmp.ne.s32.totalorder %s43, %s44
      %p58 = scmp.eq.s32.totalorder %s22, 1
      %p59 = por %p57, %p58
      %p61 = scmp.ne.s32.totalorder %s44, %s60
      %p62 = scmp.eq.s32.totalorder %s22, 0
      %p63 = por %p61, %p62
      %s65 = sadd.s32 %s64, 1
      %p68 = scmp.eq.s32.totalorder %s16, 1
      %p69 = scmp.ne.s32.totalorder %s64, %s66
      %p70 = scmp.eq.s32.totalorder %s16, 0
      %p71 = por %p69, %p70
      %p72 = scmp.ne.s32.totalorder %s64, %s66
      %p73 = scmp.eq.s32.totalorder %s21, 1
      %p74 = por %p72, %p73
      %p75 = scmp.ne.s32.totalorder %s66, %s67
      %p76 = scmp.eq.s32.totalorder %s21, 0
      %p77 = por %p75, %p76
      %p78 = scmp.ne.s32.totalorder %s66, %s67
      %p79 = scmp.eq.s32.totalorder %s22, 1
      %p80 = por %p78, %p79
      %p82 = scmp.ne.s32.totalorder %s67, %s81
      %p83 = scmp.eq.s32.totalorder %s22, 0
      %p84 = por %p82, %p83
      %s86 = sadd.s32 %s85, 1
      %p89 = scmp.eq.s32.totalorder %s16, 1
      %p90 = scmp.ne.s32.totalorder %s85, %s87
      %p91 = scmp.eq.s32.totalorder %s16, 0
      %p92 = por %p90, %p91
      %p93 = scmp.ne.s32.totalorder %s85, %s87
      %p94 = scmp.eq.s32.totalorder %s21, 1
      %p95 = por %p93, %p94
      %p96 = scmp.ne.s32.totalorder %s87, %s88
      %p97 = scmp.eq.s32.totalorder %s21, 0
      %p98 = por %p96, %p97
      %p99 = scmp.ne.s32.totalorder %s87, %s88
      %p100 = scmp.eq.s32.totalorder %s22, 1
      %p101 = por %p99, %p100
      %p103 = scmp.ne.s32.totalorder %s88, %s102
      %p104 = scmp.eq.s32.totalorder %s22, 0
      %p105 = por %p103, %p104
      %s106 = ssub.s32 %s23, %s35
      %s107 = ssub.s32 %s24, %s31
      %s108 = sor.u32 %s106, %s107
      %p109 = scmp.eq.s32.totalorder %s108, 0
      %s111 = sadd.s32 %s110, 1
      %s112 = scalar_select %p109, %s110, %s111
      %p115 = pneg %p109
      %p116 = scmp.eq.s32.totalorder %s16, 1
      %p117 = por %p115, %p116
      %p118 = scmp.ne.s32.totalorder %s110, %s113
      %p119 = scmp.eq.s32.totalorder %s16, 0
      %p120 = por %p118, %p119
      %p121 = scmp.ne.s32.totalorder %s110, %s113
      %p122 = scmp.eq.s32.totalorder %s21, 1
      %p123 = por %p121, %p122
      %p124 = scmp.ne.s32.totalorder %s113, %s114
      %p125 = scmp.eq.s32.totalorder %s21, 0
      %p126 = por %p124, %p125
      %p127 = scmp.ne.s32.totalorder %s113, %s114
      %p128 = scmp.eq.s32.totalorder %s22, 1
      %p129 = por %p127, %p128
      %p131 = scmp.ne.s32.totalorder %s114, %s130
      %p132 = scmp.eq.s32.totalorder %s22, 0
      %p133 = por %p131, %p132
      %p134 = scmp.le.s32.totalorder 1, %s16
      %p135 = scmp.lt.s32.totalorder %s16, 3
      %p136 = pnand %p134, %p135
      %p137 = pneg %p136
      // Predicated region
      $region9: #{tpu_custom_call.1} parent=5 // pred_check
        _
      $region10: #{tpu_custom_call.1} parent=5 // pred_check_branch
        %139 = sbr.rel (%p136) target = $region12
      $region11: #{tpu_custom_call.1} parent=5 // pred_region
        %s140 = ssub.s32 %s16, 1
        // Predicated region
        $region13: #{tpu_custom_call.1} parent=11 // pred_check
          %p141 = pneg %p77
        $region14: #{tpu_custom_call.1} parent=11 // pred_check_branch
          %143 = sbr.rel (%p141) target = $region16
        $region15: #{tpu_custom_call.1} parent=11 // pred_region
          %s145 = ssub.s32 256, 256
          %146 = vsyncadd [#allocation6], %s145
          %s147 = sshll.u32 [#allocation5], 4
          %s148 = int_to_ptr.vmem [resolvable:$true] %s147
          %153 = dma.hbm_to_vmem [thread:$0]  %s1, 256, %s148, [#allocation6], 64, 64, 4
        $region16: #{tpu_custom_call.1} parent=11 // pred_fallthru
          _
        // Predicated region
        $region17: #{tpu_custom_call.1} parent=11 // pred_check
          %p154 = pneg %p98
        $region18: #{tpu_custom_call.1} parent=11 // pred_check_branch
          %156 = sbr.rel (%p154) target = $region20
        $region19: #{tpu_custom_call.1} parent=11 // pred_region
          %s158 = ssub.s32 16, 16
          %159 = vsyncadd [#allocation6], %s158
          %s161 = sshll.u32 [#allocation7], 4
          %s162 = int_to_ptr.vmem [resolvable:$true] %s161
          %164 = dma.hbm_to_vmem [thread:$0]  %s2, 16, %s162, [#allocation6]
        $region20: #{tpu_custom_call.1} parent=11 // pred_fallthru
          _
      $region12: #{tpu_custom_call.1} parent=5 // pred_fallthru
        _
      %p165 = scmp.lt.s32.totalorder %s16, 2
      // Predicated region
      $region21: #{tpu_custom_call.1} parent=5 // pred_check
        %p166 = pneg %p165
      $region22: #{tpu_custom_call.1} parent=5 // pred_check_branch
        %168 = sbr.rel (%p166) target = $region24
      $region23: #{tpu_custom_call.1} parent=5 // pred_region
        // Predicated region
        $region25: #{tpu_custom_call.1} parent=23 // pred_check
          %p169 = pneg %p50
        $region26: #{tpu_custom_call.1} parent=23 // pred_check_branch
          %171 = sbr.rel (%p169) target = $region28
        $region27: #{tpu_custom_call.1} parent=23 // pred_region
          %s172 = sand.u32 %s40, 1
          %s173 = scalar_lea.sflag [#allocation3], %s172
          %s174 = sand.u32 %s40, 1
          %s175 = smul.addr %s174, 8
          %s176 = scalar_lea.vmem [#allocation2], %s175
          %s177 = smul.u32 4, %s24
          %s179 = ssub.s32 128, 128
          %180 = vsyncadd %s173, %s179
          %s181 = smul.addr %s23, 4
          %s182 = sadd.s32 %s177, %s181
          %s183 = smul.addr %s182, 32
          %s184 = scalar_lea.hbm %s0, %s183
          %s185 = sshll.u32 %s176, 4
          %s186 = int_to_ptr.vmem [resolvable:$true] %s185
          %191 = dma.hbm_to_vmem [thread:$0]  %s184, 128, %s186, %s173, 32, 32, 2
        $region28: #{tpu_custom_call.1} parent=23 // pred_fallthru
          _
      $region24: #{tpu_custom_call.1} parent=5 // pred_fallthru
        _
      %p192 = scmp.le.s32.totalorder 1, %s16
      %p193 = scmp.lt.s32.totalorder %s16, 3
      %p194 = pnand %p192, %p193
      %p195 = pneg %p194
      // Predicated region
      $region29: #{tpu_custom_call.1} parent=5 // pred_check
        _
      $region30: #{tpu_custom_call.1} parent=5 // pred_check_branch
        %197 = sbr.rel (%p194) target = $region32
      $region31: #{tpu_custom_call.1} parent=5 // pred_region
        %s198 = ssub.s32 %s16, 1
        %s199 = sand.u32 %s43, 1
        %s200 = scalar_lea.sflag [#allocation3], %s199
        %s201 = sand.u32 %s43, 1
        %s202 = smul.addr %s201, 8
        %s203 = scalar_lea.vmem [#allocation2], %s202
        // Predicated region
        $region33: #{tpu_custom_call.1} parent=31 // pred_check
          %p204 = pneg %p56
        $region34: #{tpu_custom_call.1} parent=31 // pred_check_branch
          %206 = sbr.rel (%p204) target = $region36
        $region35: #{tpu_custom_call.1} parent=31 // pred_region
          %207 = dma.done %s200, 128
        $region36: #{tpu_custom_call.1} parent=31 // pred_fallthru
          _
        // Predicated region
        $region37: #{tpu_custom_call.1} parent=31 // pred_check
          %p208 = pneg %p77
        $region38: #{tpu_custom_call.1} parent=31 // pred_check_branch
          %210 = sbr.rel (%p208) target = $region40
        $region39: #{tpu_custom_call.1} parent=31 // pred_region
          %211 = dma.done [#allocation6], 256
        $region40: #{tpu_custom_call.1} parent=31 // pred_fallthru
          _
        // Predicated region
        $region41: #{tpu_custom_call.1} parent=31 // pred_check
          %p212 = pneg %p98
        $region42: #{tpu_custom_call.1} parent=31 // pred_check_branch
          %214 = sbr.rel (%p212) target = $region44
        $region43: #{tpu_custom_call.1} parent=31 // pred_region
          %215 = dma.done [#allocation6], 16
        $region44: #{tpu_custom_call.1} parent=31 // pred_fallthru
          _
        %s216 = sand.u32 %s43, 1
        %s217 = scalar_lea.sflag [#allocation3], %s216
        %s218 = sand.u32 %s43, 1
        %s219 = smul.addr %s218, 8
        %s220 = scalar_lea.vmem [#allocation2], %s219
        %p221 = pneg %p56
        %p222 = pneg %p53
        %p223 = pneg %p77
        %p224 = pneg %p74
        %p225 = pneg %p98
        %p226 = pneg %p95
        %p227 = pneg %p126
        %p228 = pneg %p123
        %s229 = sand.u32 %s113, 1
        %s230 = scalar_lea.sflag [#allocation4], %s229
        %s231 = sand.u32 %s113, 1
        %s232 = smul.addr %s231, 8
        %s233 = scalar_lea.vmem [#allocation8], %s232
        %s234 = smul.u32 4, %s26
        %s235 = smul.u32 4, %s26
        %v237 = vld [vmem:[%s203] sm:$0x3]
        %v238 = vld [vmem:[%s203 + $0x2] sm:$0x3]
        %v239 = vld [vmem:[%s203 + $0x4] sm:$0x3]
        %v240 = vld [vmem:[%s203 + $0x6] sm:$0x3]
        %v241 = vld [vmem:[#allocation5] sm:$0xf]
        %v242 = vld [vmem:[#allocation5 + $0x4] sm:$0xf]
        %v243 = vld [vmem:[#allocation5 + $0x8] sm:$0xf]
        %v244 = vld [vmem:[#allocation5 + $0xc] sm:$0x3]
        %v245 = vld [vmem:[#allocation7] sm:$0x1]
        %v247 = vlaneseq
        %v248 = vshrl.u32 %v247, 7
        %v249 = vsub.s32 0, %v248
        %v250 = vrot.slane %v245, %v249
        %v256 = vcombine.low %v237, %v238
        %v257 = vcombine.low %v239, %v240
        %v259 = vunpack.c.l.s4 1983009808
        %v260 = vunpack.c.0.s8 %v259
        %v261 = vlaneseq
        %v262 = vshrl.u32 %v261, 7
        %v263 = vsub.s32 %v260, %v262
        %v264 = vrot.slane %v256, %v263
        %v266 = vunpack.c.l.s4 1983009808
        %v267 = vunpack.c.0.s8 %v266
        %v268 = vlaneseq
        %v269 = vshrl.u32 %v268, 7
        %v270 = vsub.s32 %v267, %v269
        %v271 = vrot.slane %v257, %v270
        %v272 = vcombine.low %v264, %v271
        %v277 = vunpack.c.l.b16 %v241
        %v278 = vunpack.c.l.b16 %v242
        %v279 = vunpack.c.l.b16 %v243
        %v280 = vunpack.c.l.b16 %v244
        %v281 = vpack.c.b16 %v278, %v277
        %v282 = vpack.c.b16 %v280, %v279
        %vm284 = vcmask 220160
        %v286 = vsel %vm284, %v272, 0
        %vm288 = vcmask 1044480
        %vm289 = vcmask 1045504
        %v290 = vsel %vm288, 4294967295, 65535
        %v291 = vsel %vm289, %v290, 0
        %v293 = vand.u32 %v282, %v291
        %295 = vmatprep.subr.bf16.mxu0 0
        %296 = vmatpush1.bf16.msra.mxu0 %v281
        %297 = vmatprep.subr.bf16.mxu0 0
        %298 = vmatpush1.bf16.msra.mxu0 %v293
        %299 = vmatprep.subr.bf16.mxu0 0
        %300 = vmatpush1.bf16.msra.mxu0 0
        %301 = vmatprep.subr.bf16.mxu0 0
        %302 = vmatpush1.bf16.msra.mxu0 0
        %303 = vmatprep.subr.bf16.mxu0 0
        %304 = vmatpush1.bf16.msra.mxu0 0
        %305 = vmatprep.subr.bf16.mxu0 0
        %306 = vmatpush1.bf16.msra.mxu0 0
        %307 = vmatprep.subr.bf16.mxu0 0
        %308 = vmatpush1.bf16.msra.mxu0 0
        %309 = vmatprep.subr.bf16.mxu0 0
        %310 = vmatpush1.bf16.msra.mxu0 0
        %311 = vmatprep.subr.bf16.mxu0 0
        %312 = vmatpush1.bf16.msra.mxu0 0
        %313 = vmatprep.subr.bf16.mxu0 0
        %314 = vmatpush1.bf16.msra.mxu0 0
        %315 = vmatprep.subr.bf16.mxu0 0
        %316 = vmatpush1.bf16.msra.mxu0 0
        %317 = vmatprep.subr.bf16.mxu0 0
        %318 = vmatpush1.bf16.msra.mxu0 0
        %319 = vmatprep.subr.bf16.mxu0 0
        %320 = vmatpush1.bf16.msra.mxu0 0
        %321 = vmatprep.subr.bf16.mxu0 0
        %322 = vmatpush1.bf16.msra.mxu0 0
        %323 = vmatprep.subr.bf16.mxu0 0
        %324 = vmatpush1.bf16.msra.mxu0 0
        %325 = vmatprep.subr.bf16.mxu0 0
        %326 = vmatpush1.bf16.msra.mxu0 0
        %327 = vmatprep.mubr.bf16.mxu0 0
        %328 = vmatmul.mubr.bf16.gmra.mrb[0].mxu0 %v286
        %v329 = vpop.f32.mrb[0].mxu0
        %v330 = vadd.f32 %v250, %v329
        %v331 = vpop.f32.mrb[0].mxu0
        %v332 = vpop.f32.mrb[0].mxu0
        %v333 = vadd.f32 %v250, %v332
        %v334 = vpop.f32.mrb[0].mxu0
        %335 = vdwg.mxu0
        %v336 = vmax.f32 %v330, 0.0
        %v337 = vmax.f32 %v333, 0.0
        %v340 = vcombine.high %v336, %v336
        %v341 = vcombine.high %v337, %v337
        %v344 = vpack.c.bf16 %v336, %v336
        %v345 = vpack.c.bf16 %v340, %v340
        %v346 = vpack.c.bf16 %v337, %v337
        %v347 = vpack.c.bf16 %v341, %v341
        %vm348 = vcmask 517120
        %349 = vst.msk [vmem:[%s233] sm:$0x3] %vm348, %v344
        %350 = vst.msk [vmem:[%s233 + $0x2] sm:$0x3] %vm348, %v345
        %351 = vst.msk [vmem:[%s233 + $0x4] sm:$0x3] %vm348, %v346
        %352 = vst.msk [vmem:[%s233 + $0x6] sm:$0x3] %vm348, %v347
        %s353 = sand.u32 %s113, 1
        %s354 = scalar_lea.sflag [#allocation4], %s353
        %s355 = sand.u32 %s113, 1
        %s356 = smul.addr %s355, 8
        %s357 = scalar_lea.vmem [#allocation8], %s356
        // Predicated region
        $region45: #{tpu_custom_call.1} parent=31 // pred_check
          %p358 = pneg %p123
        $region46: #{tpu_custom_call.1} parent=31 // pred_check_branch
          %360 = sbr.rel (%p358) target = $region48
        $region47: #{tpu_custom_call.1} parent=31 // pred_region
          %s361 = smul.u32 4, %s26
          %s363 = ssub.s32 128, 128
          %364 = vsyncadd %s354, %s363
          %s365 = smul.addr %s25, 4
          %s366 = sadd.s32 %s361, %s365
          %s367 = smul.addr %s366, 32
          %s368 = scalar_lea.hbm %s3, %s367
          %s369 = sshll.u32 %s357, 4
          %s370 = int_to_ptr.vmem [resolvable:$true] %s369
          %375 = dma.vmem_to_hbm [thread:$0]  %s370, 128, %s368, %s354, 32, 32, 2
        $region48: #{tpu_custom_call.1} parent=31 // pred_fallthru
          _
      $region32: #{tpu_custom_call.1} parent=5 // pred_fallthru
        _
      %p376 = scmp.le.s32.totalorder 2, %s16
      // Predicated region
      $region49: #{tpu_custom_call.1} parent=5 // pred_check
        %p377 = pneg %p376
      $region50: #{tpu_custom_call.1} parent=5 // pred_check_branch
        %379 = sbr.rel (%p377) target = $region52
      $region51: #{tpu_custom_call.1} parent=5 // pred_region
        %s380 = ssub.s32 %s16, 2
        // Predicated region
        $region53: #{tpu_custom_call.1} parent=51 // pred_check
          %p381 = pneg %p129
        $region54: #{tpu_custom_call.1} parent=51 // pred_check_branch
          %383 = sbr.rel (%p381) target = $region56
        $region55: #{tpu_custom_call.1} parent=51 // pred_region
          %s384 = sand.u32 %s114, 1
          %s385 = scalar_lea.sflag [#allocation4], %s384
          %s386 = sand.u32 %s114, 1
          %s387 = smul.addr %s386, 8
          %s388 = scalar_lea.vmem [#allocation8], %s387
          %389 = dma.done %s385, 128
        $region56: #{tpu_custom_call.1} parent=51 // pred_fallthru
          _
      $region52: #{tpu_custom_call.1} parent=5 // pred_fallthru
        _
    $region6: #{tpu_custom_call.1} parent=1 // loop_footer
      %s20 = sadd.s32 1, %s16
    $region7: #{tpu_custom_call.1} parent=1 // loop_footer_branch
      %15 = sbr.rel target = $region3
    $region8: #{tpu_custom_call.1} parent=1 // loop_exit
      _
    %390 = vsyncpa [#allocation3], 1
    %s391 = scalar_lea.sflag [#allocation3], 1
    %392 = vsyncpa %s391, 1
    %393 = vsyncpa [#allocation6], 1
    %394 = vsyncpa [#allocation4], 1
    %s395 = scalar_lea.sflag [#allocation4], 1
    %396 = vsyncpa %s395, 1

</llo_original>
